<compile_context>
chip_gen: v7x
topology: tpu7x:2x2x1
jax: 0.10.0
libtpu: 0.0.40
codegen_flags: <defaults>
</compile_context>

<pallas_src>
import functools

import jax
import jax.numpy as jnp
from jax.experimental import pallas as pl
from jax.experimental.pallas import tpu as pltpu


_OUT_SUB = 8      # per-tile partial-sum slab: one lane-dense (8, 128) vreg
_OUT_LANE = 128


def _distill_loss_kernel(s_ref, t_ref, tgt_ref, kl_ref, ce_ref, *,
                         temperature, n_valid_rows, tile_rows):
    """One batch tile: per-tile partial KL-sum and CE-sum.

    s_ref:   (TB, C) student logits   (VMEM)
    t_ref:   (TB, C) teacher logits   (VMEM)
    tgt_ref: (TB, 1) int32 targets    (VMEM)
    kl_ref:  (1, 8, 128) f32  sum over tile rows/classes of p_t * (log p_t - log p_s(T))
    ce_ref:  (1, 8, 128) f32  sum over tile rows of -log p_s(raw)[target]
    """
    i = pl.program_id(0)
    s = s_ref[...].astype(jnp.float32)
    t = t_ref[...].astype(jnp.float32)
    TB, C = s.shape
    T = jnp.float32(temperature)
    inv_T = jnp.float32(1.0 / temperature)

    # ---- tempered student log-softmax (dim=1) ----
    st = s * inv_T
    st_max = jnp.max(st, axis=1, keepdims=True)
    st_sh = st - st_max
    st_sum = jnp.sum(jnp.exp(st_sh), axis=1, keepdims=True)
    student_log_soft = st_sh - jnp.log(st_sum)                    # (TB, C)

    # ---- tempered teacher softmax + log-softmax (log-space: no log(0) NaNs) ----
    tt = t * inv_T
    tt_max = jnp.max(tt, axis=1, keepdims=True)
    tt_sh = tt - tt_max
    tt_exp = jnp.exp(tt_sh)
    tt_sum = jnp.sum(tt_exp, axis=1, keepdims=True)
    teacher_soft = tt_exp / tt_sum                                # (TB, C)
    teacher_log_soft = tt_sh - jnp.log(tt_sum)                    # (TB, C)

    # KLDivLoss terms: p_t * (log p_t - log p_s(T)); per-row sums.
    kl_rows = jnp.sum(teacher_soft * (teacher_log_soft - student_log_soft),
                      axis=1, keepdims=True)                      # (TB, 1)

    # ---- raw-student log-softmax, reusing the tempered max: s - max(s) = T*(s/T - max(s/T)) ----
    s_sh = st_sh * T
    s_lse = jnp.log(jnp.sum(jnp.exp(s_sh), axis=1, keepdims=True))
    log_soft = s_sh - s_lse                                       # (TB, C)

    class_iota = jax.lax.broadcasted_iota(jnp.int32, (TB, C), 1)
    picked = jnp.where(class_iota == tgt_ref[...], log_soft, 0.0)
    ce_rows = -jnp.sum(picked, axis=1, keepdims=True)             # (TB, 1)

    # ---- mask padded batch rows (when B is not a multiple of the tile) ----
    row_iota = jax.lax.broadcasted_iota(jnp.int32, (TB, 1), 0)
    valid = (i * tile_rows + row_iota) < n_valid_rows             # (TB, 1) bool
    kl_part = jnp.sum(jnp.where(valid, kl_rows, 0.0), axis=0, keepdims=True)   # (1, 1)
    ce_part = jnp.sum(jnp.where(valid, ce_rows, 0.0), axis=0, keepdims=True)   # (1, 1)

    # Lane-dense, unmasked stores of the per-tile partials.
    kl_ref[...] = jnp.broadcast_to(kl_part, (1, _OUT_SUB, _OUT_LANE))
    ce_ref[...] = jnp.broadcast_to(ce_part, (1, _OUT_SUB, _OUT_LANE))


def _pick_tile_rows(B, C, itemsize, vmem_budget_bytes):
    """Largest multiple-of-8 batch tile whose working set fits the VMEM budget."""
    # Per tile row: 2 logit tensors x 2 pipeline buffers x C x itemsize (auto DMA
    # double-buffering) + ~10 f32 (TB, C) intermediates in the kernel body.
    bytes_per_row = C * (2 * 2 * itemsize + 10 * 4) + 256
    tb = max(1, vmem_budget_bytes // bytes_per_row)
    b_padded = ((B + 7) // 8) * 8
    tb = min(int(tb), 512, b_padded)
    tb = max(8, (tb // 8) * 8)
    return tb, bytes_per_row


def distillation_loss(student_logits, teacher_logits, target, temperature, alpha,
                      *, tile_rows=None, vmem_budget_bytes=40 * 1024 * 1024):
    """Pallas TPU implementation of DistillationLoss.forward.

    Accepts f32 or bf16 logits (bf16 recommended for large vocab: halves HBM bytes;
    all math is done in f32 inside the kernel).
    """
    B, C = student_logits.shape
    itemsize = max(jnp.dtype(student_logits.dtype).itemsize,
                   jnp.dtype(teacher_logits.dtype).itemsize)
    auto_tb, bytes_per_row = _pick_tile_rows(B, C, itemsize, vmem_budget_bytes)
    if tile_rows is None:
        tile_rows = auto_tb

    num_tiles = int(pl.cdiv(B, tile_rows))
    b_padded = num_tiles * tile_rows

    target = target.astype(jnp.int32)
    if b_padded != B:
        pad = b_padded - B
        student_logits = jnp.pad(student_logits, ((0, pad), (0, 0)))
        teacher_logits = jnp.pad(teacher_logits, ((0, pad), (0, 0)))
        target = jnp.pad(target, ((0, pad),))
    tgt2d = target.reshape(b_padded, 1)

    kernel = functools.partial(
        _distill_loss_kernel,
        temperature=float(temperature),
        n_valid_rows=B,
        tile_rows=tile_rows,
    )

    vmem_limit = int(min(48 * 1024 * 1024,
                         max(16 * 1024 * 1024, 2 * bytes_per_row * tile_rows)))

    kl_parts, ce_parts = pl.pallas_call(
        kernel,
        out_shape=(
            jax.ShapeDtypeStruct((num_tiles, _OUT_SUB, _OUT_LANE), jnp.float32),
            jax.ShapeDtypeStruct((num_tiles, _OUT_SUB, _OUT_LANE), jnp.float32),
        ),
        grid=(num_tiles,),
        in_specs=[
            pl.BlockSpec((tile_rows, C), lambda i: (i, 0)),
            pl.BlockSpec((tile_rows, C), lambda i: (i, 0)),
            pl.BlockSpec((tile_rows, 1), lambda i: (i, 0)),
        ],
        out_specs=(
            pl.BlockSpec((1, _OUT_SUB, _OUT_LANE), lambda i: (i, 0, 0)),
            pl.BlockSpec((1, _OUT_SUB, _OUT_LANE), lambda i: (i, 0, 0)),
        ),
        compiler_params=pltpu.CompilerParams(
            dimension_semantics=("parallel",),
            vmem_limit_bytes=vmem_limit,
        ),
    )(student_logits, teacher_logits, tgt2d)

    # Tiny final reduction + alpha / T^2 combine in the wrapper.
    T = jnp.float32(temperature)
    a = jnp.float32(alpha)
    kl = jnp.sum(kl_parts[:, 0, 0]) / jnp.float32(B)   # KLDivLoss(reduction='batchmean')
    ce = jnp.sum(ce_parts[:, 0, 0]) / jnp.float32(B)   # cross_entropy, mean over batch
    return a * (T * T) * kl + (jnp.float32(1.0) - a) * ce


def _reference_loss(student_logits, teacher_logits, target, temperature, alpha):
    """Pure-JAX reference mirroring the PyTorch module (sanity check)."""
    T = temperature
    student_log_soft = jax.nn.log_softmax(student_logits / T, axis=1)
    teacher_soft = jax.nn.softmax(teacher_logits / T, axis=1)
    B = student_logits.shape[0]
    kl = jnp.sum(teacher_soft * (jnp.log(teacher_soft) - student_log_soft)) / B
    distill = kl * T * T
    log_soft = jax.nn.log_softmax(student_logits, axis=1)
    ce = -jnp.mean(jnp.take_along_axis(log_soft, target[:, None], axis=1))
    return alpha * distill + (1.0 - alpha) * ce


if __name__ == "__main__":
    B, C = 8, 32
    temperature = 4.0
    alpha = 0.7

    key = jax.random.PRNGKey(0)
    k1, k2, k3 = jax.random.split(key, 3)
    student_logits = jax.random.normal(k1, (B, C), dtype=jnp.float32)
    teacher_logits = jax.random.normal(k2, (B, C), dtype=jnp.float32)
    target = jax.random.randint(k3, (B,), 0, C, dtype=jnp.int32)

    loss = distillation_loss(student_logits, teacher_logits, target, temperature, alpha)
    loss = jax.block_until_ready(loss)

    ref = _reference_loss(student_logits, teacher_logits, target, temperature, alpha)
    assert jnp.allclose(loss, ref, rtol=1e-5, atol=1e-5), (loss, ref)

    print("KERNEL_OK")
</pallas_src>

<mosaic_0001>
module attributes {stable_mosaic.version = 11 : i64} {
  func.func @_distill_loss_kernel(%arg0: i32, %arg1: memref<8x32xf32, #tpu.memory_space<vmem>>, %arg2: memref<8x32xf32, #tpu.memory_space<vmem>>, %arg3: memref<8x1xi32, #tpu.memory_space<vmem>>, %arg4: memref<1x8x128xf32, #tpu.memory_space<vmem>>, %arg5: memref<1x8x128xf32, #tpu.memory_space<vmem>>) attributes {dimension_semantics = [#tpu.dimension_semantics<parallel>], iteration_bounds = array<i64: 1>, scalar_prefetch = 0 : i64, scratch_operands = 0 : i64, tpu.core_type = #tpu.core_type<tc>, window_params = [{transform_indices = @transform_0, window_bounds = array<i64: 8, 32>}, {transform_indices = @transform_1, window_bounds = array<i64: 8, 32>}, {transform_indices = @transform_2, window_bounds = array<i64: 8, 1>}, {transform_indices = @transform_3, window_bounds = array<i64: 1, 8, 128>}, {transform_indices = @transform_4, window_bounds = array<i64: 1, 8, 128>}]} {
    %c0 = arith.constant 0 : index
    %c0_0 = arith.constant 0 : index
    %0 = vector.load %arg1[%c0, %c0_0] : memref<8x32xf32, #tpu.memory_space<vmem>>, vector<8x32xf32>
    %c0_1 = arith.constant 0 : index
    %c0_2 = arith.constant 0 : index
    %1 = vector.load %arg2[%c0_1, %c0_2] : memref<8x32xf32, #tpu.memory_space<vmem>>, vector<8x32xf32>
    %cst = arith.constant 2.500000e-01 : f32
    %2 = vector.broadcast %cst : f32 to vector<8x32xf32>
    %3 = arith.mulf %0, %2 : vector<8x32xf32>
    %cst_3 = arith.constant dense<0xFF800000> : vector<8xf32>
    %4 = vector.multi_reduction <maximumf>, %3, %cst_3 [1] : vector<8x32xf32> to vector<8xf32>
    %5 = vector.shape_cast %4 : vector<8xf32> to vector<8x1xf32>
    %6 = vector.broadcast %5 : vector<8x1xf32> to vector<8x32xf32>
    %7 = arith.subf %3, %6 : vector<8x32xf32>
    %8 = math.exp %7 : vector<8x32xf32>
    %cst_4 = arith.constant dense<0.000000e+00> : vector<8xf32>
    %9 = vector.multi_reduction <add>, %8, %cst_4 [1] : vector<8x32xf32> to vector<8xf32>
    %10 = vector.shape_cast %9 : vector<8xf32> to vector<8x1xf32>
    %11 = math.log %10 : vector<8x1xf32>
    %12 = vector.broadcast %11 : vector<8x1xf32> to vector<8x32xf32>
    %13 = arith.subf %7, %12 : vector<8x32xf32>
    %cst_5 = arith.constant 2.500000e-01 : f32
    %14 = vector.broadcast %cst_5 : f32 to vector<8x32xf32>
    %15 = arith.mulf %1, %14 : vector<8x32xf32>
    %cst_6 = arith.constant dense<0xFF800000> : vector<8xf32>
    %16 = vector.multi_reduction <maximumf>, %15, %cst_6 [1] : vector<8x32xf32> to vector<8xf32>
    %17 = vector.shape_cast %16 : vector<8xf32> to vector<8x1xf32>
    %18 = vector.broadcast %17 : vector<8x1xf32> to vector<8x32xf32>
    %19 = arith.subf %15, %18 : vector<8x32xf32>
    %20 = math.exp %19 : vector<8x32xf32>
    %cst_7 = arith.constant dense<0.000000e+00> : vector<8xf32>
    %21 = vector.multi_reduction <add>, %20, %cst_7 [1] : vector<8x32xf32> to vector<8xf32>
    %22 = vector.shape_cast %21 : vector<8xf32> to vector<8x1xf32>
    %23 = vector.broadcast %22 : vector<8x1xf32> to vector<8x32xf32>
    %24 = arith.divf %20, %23 : vector<8x32xf32>
    %25 = math.log %22 : vector<8x1xf32>
    %26 = vector.broadcast %25 : vector<8x1xf32> to vector<8x32xf32>
    %27 = arith.subf %19, %26 : vector<8x32xf32>
    %28 = arith.subf %27, %13 : vector<8x32xf32>
    %29 = arith.mulf %24, %28 : vector<8x32xf32>
    %cst_8 = arith.constant dense<0.000000e+00> : vector<8xf32>
    %30 = vector.multi_reduction <add>, %29, %cst_8 [1] : vector<8x32xf32> to vector<8xf32>
    %31 = vector.shape_cast %30 : vector<8xf32> to vector<8x1xf32>
    %cst_9 = arith.constant 4.000000e+00 : f32
    %32 = vector.broadcast %cst_9 : f32 to vector<8x32xf32>
    %33 = arith.mulf %7, %32 : vector<8x32xf32>
    %34 = math.exp %33 : vector<8x32xf32>
    %cst_10 = arith.constant dense<0.000000e+00> : vector<8xf32>
    %35 = vector.multi_reduction <add>, %34, %cst_10 [1] : vector<8x32xf32> to vector<8xf32>
    %36 = vector.shape_cast %35 : vector<8xf32> to vector<8x1xf32>
    %37 = math.log %36 : vector<8x1xf32>
    %38 = vector.broadcast %37 : vector<8x1xf32> to vector<8x32xf32>
    %39 = arith.subf %33, %38 : vector<8x32xf32>
    %40 = tpu.iota {dimensions = array<i32: 1>} : vector<8x32xi32>
    %c0_11 = arith.constant 0 : index
    %c0_12 = arith.constant 0 : index
    %41 = vector.load %arg3[%c0_11, %c0_12] : memref<8x1xi32, #tpu.memory_space<vmem>>, vector<8x1xi32>
    %42 = vector.broadcast %41 : vector<8x1xi32> to vector<8x32xi32>
    %43 = arith.cmpi eq, %40, %42 : vector<8x32xi32>
    %cst_13 = arith.constant 0.000000e+00 : f32
    %44 = vector.broadcast %cst_13 : f32 to vector<8x32xf32>
    %45 = arith.select %43, %39, %44 : vector<8x32xi1>, vector<8x32xf32>
    %cst_14 = arith.constant dense<0.000000e+00> : vector<8xf32>
    %46 = vector.multi_reduction <add>, %45, %cst_14 [1] : vector<8x32xf32> to vector<8xf32>
    %47 = vector.shape_cast %46 : vector<8xf32> to vector<8x1xf32>
    %cst_15 = arith.constant 0.000000e+00 : f32
    %48 = vector.broadcast %cst_15 : f32 to vector<8x1xf32>
    %49 = arith.subf %48, %47 : vector<8x1xf32>
    %50 = tpu.iota {dimensions = array<i32: 0>} : vector<8x1xi32>
    %c8_i32 = arith.constant 8 : i32
    %51 = arith.muli %arg0, %c8_i32 : i32
    %52 = vector.broadcast %51 : i32 to vector<8x1xi32>
    %53 = arith.addi %52, %50 : vector<8x1xi32>
    %c8_i32_16 = arith.constant 8 : i32
    %54 = vector.broadcast %c8_i32_16 : i32 to vector<8x1xi32>
    %55 = arith.cmpi slt, %53, %54 : vector<8x1xi32>
    %cst_17 = arith.constant 0.000000e+00 : f32
    %56 = vector.broadcast %cst_17 : f32 to vector<8x1xf32>
    %57 = arith.select %55, %31, %56 : vector<8x1xi1>, vector<8x1xf32>
    %cst_18 = arith.constant dense<0.000000e+00> : vector<1xf32>
    %58 = vector.multi_reduction <add>, %57, %cst_18 [0] : vector<8x1xf32> to vector<1xf32>
    %59 = vector.shape_cast %58 : vector<1xf32> to vector<1x1xf32>
    %cst_19 = arith.constant 0.000000e+00 : f32
    %60 = vector.broadcast %cst_19 : f32 to vector<8x1xf32>
    %61 = arith.select %55, %49, %60 : vector<8x1xi1>, vector<8x1xf32>
    %cst_20 = arith.constant dense<0.000000e+00> : vector<1xf32>
    %62 = vector.multi_reduction <add>, %61, %cst_20 [0] : vector<8x1xf32> to vector<1xf32>
    %63 = vector.shape_cast %62 : vector<1xf32> to vector<1x1xf32>
    %64 = vector.shape_cast %59 : vector<1x1xf32> to vector<1x1x1xf32>
    %65 = vector.broadcast %64 : vector<1x1x1xf32> to vector<1x8x128xf32>
    %c0_21 = arith.constant 0 : index
    %c0_22 = arith.constant 0 : index
    %c0_23 = arith.constant 0 : index
    %66 = vector.load %arg4[%c0_21, %c0_22, %c0_23] : memref<1x8x128xf32, #tpu.memory_space<vmem>>, vector<1x8x128xf32>
    tpu.vector_store %arg4[%c0_21, %c0_22, %c0_23], %65 {strides = array<i32>} : memref<1x8x128xf32, #tpu.memory_space<vmem>>, vector<1x8x128xf32>,
    %67 = vector.shape_cast %63 : vector<1x1xf32> to vector<1x1x1xf32>
    %68 = vector.broadcast %67 : vector<1x1x1xf32> to vector<1x8x128xf32>
    %c0_24 = arith.constant 0 : index
    %c0_25 = arith.constant 0 : index
    %c0_26 = arith.constant 0 : index
    %69 = vector.load %arg5[%c0_24, %c0_25, %c0_26] : memref<1x8x128xf32, #tpu.memory_space<vmem>>, vector<1x8x128xf32>
    tpu.vector_store %arg5[%c0_24, %c0_25, %c0_26], %68 {strides = array<i32>} : memref<1x8x128xf32, #tpu.memory_space<vmem>>, vector<1x8x128xf32>,
    return
  }
  func.func @transform_0(%arg0: i32) -> (i32, i32) {
    %c0_i32 = arith.constant 0 : i32
    %c0_i32_0 = arith.constant 0 : i32
    return %arg0, %c0_i32 : i32, i32
  }
  func.func @transform_1(%arg0: i32) -> (i32, i32) {
    %c0_i32 = arith.constant 0 : i32
    %c0_i32_0 = arith.constant 0 : i32
    return %arg0, %c0_i32 : i32, i32
  }
  func.func @transform_2(%arg0: i32) -> (i32, i32) {
    %c0_i32 = arith.constant 0 : i32
    %c0_i32_0 = arith.constant 0 : i32
    return %arg0, %c0_i32 : i32, i32
  }
  func.func @transform_3(%arg0: i32) -> (i32, i32, i32) {
    %c0_i32 = arith.constant 0 : i32
    %c0_i32_0 = arith.constant 0 : i32
    %c0_i32_1 = arith.constant 0 : i32
    return %arg0, %c0_i32, %c0_i32_0 : i32, i32, i32
  }
  func.func @transform_4(%arg0: i32) -> (i32, i32, i32) {
    %c0_i32 = arith.constant 0 : i32
    %c0_i32_0 = arith.constant 0 : i32
    %c0_i32_1 = arith.constant 0 : i32
    return %arg0, %c0_i32, %c0_i32_0 : i32, i32, i32
  }
}

</mosaic_0001>

<llo_original>
// kernel: tpu_custom_call.1
$region0: #{tpu_custom_call.1}
  #allocation0 [shape = 'u32[]', space=smem, size = 0x4, offset = 0x4, fixed_abs, tag = 'smem constant byte address 0x4 - core index']
  #allocation1 [shape = 'u32[144,128]{1,0:T(1,128)}', space=vmem, size = 0x12000, scoped, tag = 'internal scratch']
  %s0 = inlined_call_operand.vmem [shape: f32[8,32], index: 0, kind: input, shape index: {}]
  %s1 = inlined_call_operand.hbm [shape: f32[8,32], index: 1, kind: input, shape index: {}]
  %s2 = inlined_call_operand.vmem [shape: s32[8,1], index: 2, kind: input, shape index: {}]
  %s3 = inlined_call_operand.hbm [shape: f32[1,8,128], index: 3, kind: output, shape index: {0}]
  %s4 = inlined_call_operand.hbm [shape: f32[1,8,128], index: 4, kind: output, shape index: {1}]
  %5 = xla_tuple %s3, %s4
  %s6 = sld [smem:[#allocation0]]
  $region34: #{tpu_custom_call.1} parent=0
    _
  %s8 = ssub.s32 1, %s6
  %s9 = scalar_select 0, %s8, %s6
  $region1: #{tpu_custom_call.1} parent=0
    #allocation2 [shape = 'u8[4096]{0}', space=vmem, size = 0x1000, scoped, tag = 'input window, operand 1, single buffered']
    #allocation3 [shape = 's32[1]{0}', space=sflag, size = 0x4, scoped, tag = 'scoped memory for tpu_custom_call.1']
    #allocation4 [shape = 's32[1]{0}', space=sflag, size = 0x4, scoped, tag = 'scoped memory for tpu_custom_call.1']
    #allocation5 [shape = 'u8[4096]{0}', space=vmem, size = 0x1000, scoped, tag = 'output window, operand 0, single buffered']
    #allocation6 [shape = 'u8[4096]{0}', space=vmem, size = 0x1000, scoped, tag = 'output window, operand 1, single buffered']
    #allocation7 [shape = 's32[1]{0}', space=sflag, size = 0x4, scoped, tag = 'scoped memory for tpu_custom_call.1']
    %10 = vsyncpa [#allocation3], 0
    %11 = vsyncpa [#allocation4], 0
    %12 = vsyncpa [#allocation7], 0
    // Predicated region
    $region2: #{tpu_custom_call.1} parent=1 // pred_check
      _
    $region3: #{tpu_custom_call.1} parent=1 // pred_check_branch
      %14 = sbr.rel (0) target = $region5
    $region4: #{tpu_custom_call.1} parent=1 // pred_region
      _
    $region5: #{tpu_custom_call.1} parent=1 // pred_fallthru
      _
    // Predicated region
    $region6: #{tpu_custom_call.1} parent=1 // pred_check
      _
    $region7: #{tpu_custom_call.1} parent=1 // pred_check_branch
      %16 = sbr.rel (0) target = $region9
    $region8: #{tpu_custom_call.1} parent=1 // pred_region
      %s18 = ssub.s32 128, 128
      %19 = vsyncadd [#allocation3], %s18
      %s21 = sshll.u32 [#allocation2], 4
      %s22 = int_to_ptr.vmem [resolvable:$true] %s21
      %24 = dma.hbm_to_vmem [thread:$0]  %s1, 128, %s22, [#allocation3]
    $region9: #{tpu_custom_call.1} parent=1 // pred_fallthru
      _
    // Predicated region
    $region10: #{tpu_custom_call.1} parent=1 // pred_check
      _
    $region11: #{tpu_custom_call.1} parent=1 // pred_check_branch
      %26 = sbr.rel (0) target = $region13
    $region12: #{tpu_custom_call.1} parent=1 // pred_region
      _
    $region13: #{tpu_custom_call.1} parent=1 // pred_fallthru
      _
    // Predicated region
    $region14: #{tpu_custom_call.1} parent=1 // pred_check
      _
    $region15: #{tpu_custom_call.1} parent=1 // pred_check_branch
      %28 = sbr.rel (0) target = $region17
    $region16: #{tpu_custom_call.1} parent=1 // pred_region
      %29 = dma.done [#allocation3], 128
    $region17: #{tpu_custom_call.1} parent=1 // pred_fallthru
      _
    %v30 = vld [vmem:[%s0] sm:$0xff]
    %v31 = vld [vmem:[#allocation2] sm:$0xff]
    %v32 = vmul.f32 %v30, 0.25
    %vm33 = vcmask 261120
    %v34 = vsel %vm33, %v32, -inf
    %35 = vmax.xlane.f32.xlu0 %v34
    %v36 = vpop.xlane.xlu0 %35
    %v37 = vsub.f32 %v32, %v36
    %v38 = vmul.f32 %v37, 1.442695
    %v39 = vpow.pop %v38
    %v40 = vsel %vm33, %v39, 0.0
    %41 = vadd.xlane.f32.xlu0 %v40
    %v42 = vpop.xlane.xlu0 %41
    %v43 = vlog2.pop %v42
    %v44 = vmul.f32 %v43, 0.6931472
    %v45 = vsub.f32 %v37, %v44
    %v46 = vmul.f32 %v31, 0.25
    %v47 = vsel %vm33, %v46, -inf
    %48 = vmax.xlane.f32.xlu0 %v47
    %v49 = vpop.xlane.xlu0 %48
    %v50 = vsub.f32 %v46, %v49
    %v51 = vmul.f32 %v50, 1.442695
    %v52 = vpow.pop %v51
    %v53 = vsel %vm33, %v52, 0.0
    %54 = vadd.xlane.f32.xlu0 %v53
    %v55 = vpop.xlane.xlu0 %54
    %v56 = vrcp.pop %v55
    %v57 = vmul.f32 %v52, %v56
    %v58 = vlog2.pop %v55
    %v59 = vmul.f32 %v58, 0.6931472
    %v60 = vsub.f32 %v50, %v59
    %v61 = vsub.f32 %v60, %v45
    %v62 = vmul.f32 %v57, %v61
    %v63 = vsel %vm33, %v62, 0.0
    %64 = vadd.xlane.f32.xlu0 %v63
    %v65 = vpop.xlane.xlu0 %64
    %v66 = vmul.f32 %v37, 4.0
    %v67 = vmul.f32 %v66, 1.442695
    %v68 = vpow.pop %v67
    %v69 = vsel %vm33, %v68, 0.0
    %70 = vadd.xlane.f32.xlu0 %v69
    %v71 = vpop.xlane.xlu0 %70
    %v72 = vlog2.pop %v71
    %v73 = vmul.f32 %v72, 0.6931472
    %v74 = vsub.f32 %v66, %v73
    %v75 = vlaneseq
    %v76 = vand.u32 %v75, 127
    %v77 = vld [vmem:[%s2] sm:$0xff]
    %78 = vset.pattern.permute.xlu0 0
    %79 = vperm.xlu0 %78, %v77
    %v80 = vpop.permute.xlu0 %79
    %vm81 = vcmp.eq.s32.totalorder %v76, %v80
    %v82 = vsel %vm81, %v74, 0.0
    %v83 = vsel %vm33, %v82, 0.0
    %84 = vadd.xlane.f32.xlu0 %v83
    %v85 = vpop.xlane.xlu0 %84
    %v86 = vsub.f32 0.0, %v85
    %v87 = vlaneseq
    %v88 = vshrl.u32 %v87, 7
    %s89 = smul.u32 0, 8
    %v90 = vstv %s89
    %v91 = vadd.s32 %v90, %v88
    %vm92 = vcmp.lt.s32.totalorder %v91, 8
    %v93 = vsel %vm92, %v65, 0.0
    %v94 = vrot.slane %v93, 4
    %v95 = vadd.f32 %v93, %v94
    %v96 = vrot.slane %v95, 2
    %v97 = vadd.f32 %v95, %v96
    %v98 = vrot.slane %v97, 1
    %v99 = vadd.f32 %v97, %v98
    %v100 = vsel %vm92, %v86, 0.0
    %v101 = vrot.slane %v100, 4
    %v102 = vadd.f32 %v100, %v101
    %v103 = vrot.slane %v102, 2
    %v104 = vadd.f32 %v102, %v103
    %v105 = vrot.slane %v104, 1
    %v106 = vadd.f32 %v104, %v105
    %107 = vst [vmem:[#allocation5] sm:$0xff] %v99
    %108 = vst [vmem:[#allocation6] sm:$0xff] %v106
    // Predicated region
    $region18: #{tpu_custom_call.1} parent=1 // pred_check
      _
    $region19: #{tpu_custom_call.1} parent=1 // pred_check_branch
      %110 = sbr.rel (0) target = $region21
    $region20: #{tpu_custom_call.1} parent=1 // pred_region
      %s112 = ssub.s32 128, 128
      %113 = vsyncadd [#allocation4], %s112
      %s115 = sshll.u32 [#allocation5], 4
      %s116 = int_to_ptr.vmem [resolvable:$true] %s115
      %118 = dma.vmem_to_hbm [thread:$0]  %s116, 128, %s3, [#allocation4]
    $region21: #{tpu_custom_call.1} parent=1 // pred_fallthru
      _
    // Predicated region
    $region22: #{tpu_custom_call.1} parent=1 // pred_check
      _
    $region23: #{tpu_custom_call.1} parent=1 // pred_check_branch
      %120 = sbr.rel (0) target = $region25
    $region24: #{tpu_custom_call.1} parent=1 // pred_region
      %s122 = ssub.s32 128, 128
      %123 = vsyncadd [#allocation7], %s122
      %s125 = sshll.u32 [#allocation6], 4
      %s126 = int_to_ptr.vmem [resolvable:$true] %s125
      %128 = dma.vmem_to_hbm [thread:$0]  %s126, 128, %s4, [#allocation7]
    $region25: #{tpu_custom_call.1} parent=1 // pred_fallthru
      _
    // Predicated region
    $region26: #{tpu_custom_call.1} parent=1 // pred_check
      _
    $region27: #{tpu_custom_call.1} parent=1 // pred_check_branch
      %130 = sbr.rel (0) target = $region29
    $region28: #{tpu_custom_call.1} parent=1 // pred_region
      %131 = dma.done [#allocation4], 128
    $region29: #{tpu_custom_call.1} parent=1 // pred_fallthru
      _
    // Predicated region
    $region30: #{tpu_custom_call.1} parent=1 // pred_check
      _
    $region31: #{tpu_custom_call.1} parent=1 // pred_check_branch
      %133 = sbr.rel (0) target = $region33
    $region32: #{tpu_custom_call.1} parent=1 // pred_region
      %134 = dma.done [#allocation7], 128
    $region33: #{tpu_custom_call.1} parent=1 // pred_fallthru
      _
    %135 = vsyncpa [#allocation3], 1
    %136 = vsyncpa [#allocation4], 1
    %137 = vsyncpa [#allocation7], 1

</llo_original>
